<compile_context>
chip_gen: v5e
topology: v5e:2x2
jax: 0.10.0
libtpu: 0.0.40
codegen_flags: <defaults>
</compile_context>

<pallas_src>
import functools

import numpy as np
import jax
import jax.numpy as jnp
from jax.experimental import pallas as pl
from jax.experimental.pallas import tpu as pltpu


_VMEM = pl.BlockSpec(memory_space=pltpu.MemorySpace.VMEM)


# ----------------------------------------------------------------------------
# Fused kernel: embed -> L x GCNLayer -> mean readout -> MLPReadout(32,1,L=2)
# ----------------------------------------------------------------------------
def _gcn_net_fused_kernel(a_ref, r_ref, idx_ref, emb_ref, w_ref, b_ref, o_ref,
                          *, n_layers, n_mlp, residual_flags, compute_dtype):
    f32 = jnp.float32

    # --- h = embedding_h(h): in-kernel one-hot gather via MXU ---------------
    # atom indices are < num_atom_type <= padded table rows, so padded rows of
    # the embedding table are never selected.
    idx = idx_ref[...]                                          # (N, 1) int32
    n_nodes = idx.shape[0]
    n_types = emb_ref.shape[0]
    iota = jax.lax.broadcasted_iota(jnp.int32, (n_nodes, n_types), 1)
    onehot = (iota == idx).astype(compute_dtype)                # (N, T)
    h = jnp.dot(onehot, emb_ref[...].astype(compute_dtype),
                preferred_element_type=f32)                     # (N, D) f32

    # --- L GCN layers (BatchNorm folded into w/b offline) -------------------
    a_c = a_ref[...].astype(compute_dtype)                      # (N, N)
    for l in range(n_layers):
        w = w_ref[l].astype(compute_dtype)                      # (D, D)
        b = b_ref[l]                                            # (1, D) f32
        ah = jnp.dot(a_c, h.astype(compute_dtype),
                     preferred_element_type=f32)                # message pass
        z = jnp.dot(ah.astype(compute_dtype), w,
                    preferred_element_type=f32) + b             # linear + bias
        z = jnp.maximum(z, 0.0)                                 # ReLU (f32 VPU)
        if residual_flags[l]:
            z = h + z                                           # residual
        h = z
        # Dropout is identity at inference.

    # --- hg = mean_nodes(g, 'h'):  (G_pad, N) @ (N, D) -----------------------
    hg = jnp.dot(r_ref[...].astype(compute_dtype), h.astype(compute_dtype),
                 preferred_element_type=f32)                    # (G_pad, D)

    # --- MLPReadout: 32 -> 16 -> 8 -> 1, zero-padded to width D --------------
    # Padded weight columns/rows and biases are zero, so the real result ends
    # up in column 0; padded columns stay exactly 0 through the ReLUs.
    y = hg
    for i in range(n_mlp):
        w = w_ref[n_layers + i].astype(compute_dtype)
        b = b_ref[n_layers + i]
        y = jnp.dot(y.astype(compute_dtype), w,
                    preferred_element_type=f32) + b
        if i < n_mlp - 1:
            y = jnp.maximum(y, 0.0)

    o_ref[...] = y                                              # (G_pad, D)


def gcn_net_fused_call(a_norm, r_pad, atom_idx, emb, w_all, b_all, *,
                       n_layers, residual_flags,
                       compute_dtype=jnp.float32):
    n = a_norm.shape[0]
    g_pad = r_pad.shape[0]
    d = w_all.shape[-1]
    n_mlp = w_all.shape[0] - n_layers

    kernel = functools.partial(
        _gcn_net_fused_kernel,
        n_layers=n_layers, n_mlp=n_mlp,
        residual_flags=tuple(residual_flags),
        compute_dtype=compute_dtype)

    flops = 2 * (n * emb.shape[0] * d                 # embedding one-hot matmul
                 + n_layers * (n * n * d + n * d * d) # GCN layers
                 + g_pad * n * d                      # mean readout
                 + n_mlp * g_pad * d * d)             # MLP readout
    bytes_accessed = (a_norm.size + r_pad.size + emb.size + w_all.size
                      + b_all.size + atom_idx.size + g_pad * d) * 4

    return pl.pallas_call(
        kernel,
        out_shape=jax.ShapeDtypeStruct((g_pad, d), jnp.float32),
        in_specs=[_VMEM] * 6,
        out_specs=_VMEM,
        cost_estimate=pl.CostEstimate(flops=flops, transcendentals=0,
                                      bytes_accessed=bytes_accessed),
    )(a_norm, r_pad, atom_idx, emb, w_all, b_all)


# ----------------------------------------------------------------------------
# One-time, off-the-critical-path parameter preparation (numpy, no XLA ops).
# ----------------------------------------------------------------------------
def prepare_gcn_params(params, num_atom_type, hidden_dim, out_dim, eps=1e-5):
    layers = params["layers"]
    n_layers = len(layers)
    d = max(hidden_dim, out_dim)
    n_mlp = 3

    w_all = np.zeros((n_layers + n_mlp, d, d), np.float32)
    b_all = np.zeros((n_layers + n_mlp, 1, d), np.float32)

    # Fold inference BatchNorm1d into the GraphConv linear weights:
    #   scale = gamma * rsqrt(var + eps);  W' = W*scale;  b' = (b-mean)*scale+beta
    for l, layer in enumerate(layers):
        w = np.asarray(layer["w"], np.float32)
        b = np.asarray(layer["b"], np.float32)
        scale = (np.asarray(layer["gamma"], np.float32)
                 / np.sqrt(np.asarray(layer["var"], np.float32) + eps))
        wf = w * scale
        bf = (b - np.asarray(layer["mean"], np.float32)) * scale \
             + np.asarray(layer["beta"], np.float32)
        w_all[l, :wf.shape[0], :wf.shape[1]] = wf
        b_all[l, :, :bf.shape[1]] = bf

    # MLPReadout weights, zero-padded into the same slab (result -> column 0).
    mlp = [(params["mlp_w0"], params["mlp_b0"]),
           (params["mlp_w1"], params["mlp_b1"]),
           (params["mlp_w2"], params["mlp_b2"])]
    for i, (w, b) in enumerate(mlp):
        w = np.asarray(w, np.float32)
        b = np.asarray(b, np.float32)
        w_all[n_layers + i, :w.shape[0], :w.shape[1]] = w
        b_all[n_layers + i, :, :b.shape[1]] = b

    # Embedding table padded to a sublane multiple (rows never selected are 0).
    t_pad = ((num_atom_type + 7) // 8) * 8
    emb = np.zeros((t_pad, hidden_dim), np.float32)
    emb[:num_atom_type] = np.asarray(params["embedding"], np.float32)

    return dict(emb=jnp.asarray(emb),
                w_all=jnp.asarray(w_all),
                b_all=jnp.asarray(b_all))


def make_gcn_net_forward(residual_flags, n_graphs, compute_dtype=jnp.float32):
    residual_flags = tuple(bool(f) for f in residual_flags)

    @jax.jit
    def forward(a_norm, r_pad, atom_idx, emb, w_all, b_all):
        out = gcn_net_fused_call(
            a_norm, r_pad, atom_idx, emb, w_all, b_all,
            n_layers=len(residual_flags),
            residual_flags=residual_flags,
            compute_dtype=compute_dtype)
        return out[:n_graphs, 0]          # matches MLP_layer(hg).flatten()

    return forward


# ----------------------------------------------------------------------------
# Plain-JAX reference (unfused, unfolded BN, HIGHEST precision)
# ----------------------------------------------------------------------------
def gcn_net_reference(a_norm, readout_mat, atom_types, params, residual_flags,
                      eps=1e-5):
    dot = functools.partial(jnp.dot, precision=jax.lax.Precision.HIGHEST)
    h = params["embedding"][atom_types]
    for res, layer in zip(residual_flags, params["layers"]):
        z = dot(dot(a_norm, h), layer["w"]) + layer["b"]
        inv = 1.0 / jnp.sqrt(layer["var"] + eps)
        z = (z - layer["mean"]) * (layer["gamma"] * inv) + layer["beta"]
        z = jnp.maximum(z, 0.0)
        if res:
            z = h + z
        h = z
    hg = dot(readout_mat, h)
    y = jnp.maximum(dot(hg, params["mlp_w0"]) + params["mlp_b0"], 0.0)
    y = jnp.maximum(dot(y, params["mlp_w1"]) + params["mlp_b1"], 0.0)
    y = dot(y, params["mlp_w2"]) + params["mlp_b2"]
    return y.flatten()


# ----------------------------------------------------------------------------
# Main
# ----------------------------------------------------------------------------
if __name__ == "__main__":
    # ---- net_params (consistent with the molecules benchmark) ---------------
    num_atom_type = 28
    num_bond_type = 4
    hidden_dim = 32
    out_dim = 32
    n_layers = 4                 # L
    residual = True
    # readout='mean', batch_norm=True, dropouts=0.0 (inference)

    # ---- batched graph: 4 molecule-sized graphs, block-diagonal adjacency ---
    sizes = [9, 7, 11, 6]
    G = len(sizes)
    G_pad = 8                    # lane/sublane-friendly padded graph count
    N = sum(sizes)               # 33 real nodes
    N_pad = ((N + 7) // 8) * 8   # 40: sublane-aligned
    offsets = np.cumsum([0] + sizes[:-1]).tolist()

    A = np.zeros((N_pad, N_pad), np.float32)
    for off, n in zip(offsets, sizes):
        for i in range(n):       # ring inside each graph
            j = (i + 1) % n
            A[off + i, off + j] = 1.0
            A[off + j, off + i] = 1.0
    for off, (i, j) in zip(offsets, [(0, 4), (2, 5), (1, 7), (0, 3)]):
        A[off + i, off + j] = 1.0   # a few intra-graph chords
        A[off + j, off + i] = 1.0

    # Invariant guarding padded nodes: their A rows/cols and R cols must be 0
    # (so random padded atom_types never influence real nodes or the readout).
    assert np.all(A[N:, :] == 0.0) and np.all(A[:, N:] == 0.0)

    # Symmetric normalization D^-1/2 A D^-1/2 (GraphConv norm='both').
    deg = A.sum(axis=1)
    d_inv_sqrt = 1.0 / np.sqrt(np.maximum(deg, 1.0))   # zero-degree clamped
    a_norm = jnp.asarray(d_inv_sqrt[:, None] * A * d_inv_sqrt[None, :],
                         jnp.float32)

    R = np.zeros((G_pad, N_pad), np.float32)           # mean_nodes pooling
    for g, (off, n) in enumerate(zip(offsets, sizes)):
        R[g, off:off + n] = 1.0 / n
    assert np.all(R[:, N:] == 0.0) and np.all(R[G:, :] == 0.0)
    r_pad = jnp.asarray(R, jnp.float32)

    # ---- deterministic inputs / parameters ----------------------------------
    key = jax.random.PRNGKey(0)
    keys = iter(jax.random.split(key, 64))

    atom_types = jax.random.randint(next(keys), (N_pad,), 0, num_atom_type)
    _bond_types = jax.random.randint(next(keys), (2 * N,), 0, num_bond_type)
    # (edge features `e` are ignored by GCNNet.forward, as in the reference)

    def dense(k, shape, scale=0.1):
        return (scale * jax.random.normal(k, shape)).astype(jnp.float32)

    params = {"embedding": dense(next(keys), (num_atom_type, hidden_dim))}

    layer_dims = [(hidden_dim, hidden_dim)] * (n_layers - 1) + [(hidden_dim, out_dim)]
    layers, residual_flags = [], []
    for din, dout in layer_dims:
        layers.append({
            "w": dense(next(keys), (din, dout)),
            "b": dense(next(keys), (1, dout)),
            "gamma": 1.0 + dense(next(keys), (1, dout)),
            "beta": dense(next(keys), (1, dout)),
            "mean": dense(next(keys), (1, dout)),
            "var": 1.0 + jnp.abs(dense(next(keys), (1, dout))),
        })
        residual_flags.append(residual and din == dout)
    params["layers"] = layers

    # MLPReadout(out_dim, 1, L=2): 32 -> 16 -> 8 -> 1
    params["mlp_w0"] = dense(next(keys), (out_dim, out_dim // 2))
    params["mlp_b0"] = dense(next(keys), (1, out_dim // 2))
    params["mlp_w1"] = dense(next(keys), (out_dim // 2, out_dim // 4))
    params["mlp_b1"] = dense(next(keys), (1, out_dim // 4))
    params["mlp_w2"] = dense(next(keys), (out_dim // 4, 1))
    params["mlp_b2"] = dense(next(keys), (1, 1))

    # ---- one-time prep: BN fold + slab packing (off the per-call path) ------
    packed = prepare_gcn_params(params, num_atom_type, hidden_dim, out_dim)
    atom_idx = jnp.asarray(np.asarray(atom_types).reshape(N_pad, 1), jnp.int32)

    # ---- run fused Pallas forward (f32 MXU operands, tight gate) ------------
    forward_f32 = make_gcn_net_forward(residual_flags, G,
                                       compute_dtype=jnp.float32)
    scores = forward_f32(a_norm, r_pad, atom_idx,
                         packed["emb"], packed["w_all"], packed["b_all"])
    jax.block_until_ready(scores)
    assert scores.shape == (G,)

    ref = gcn_net_reference(a_norm, r_pad[:G], atom_types, params,
                            residual_flags)
    # Tolerance intent: MXU default (bf16-decomposed) f32 matmuls + BN-fold
    # reordering vs. a HIGHEST-precision unfolded reference.
    np.testing.assert_allclose(np.asarray(scores), np.asarray(ref),
                               rtol=5e-3, atol=1e-4)

    # ---- bf16 MXU-operand variant (per review; looser gate since inputs are
    # rounded to bf16 — mainly relevant for the future tiled large-N path) ----
    forward_bf16 = make_gcn_net_forward(residual_flags, G,
                                        compute_dtype=jnp.bfloat16)
    scores_bf16 = forward_bf16(a_norm, r_pad, atom_idx,
                               packed["emb"], packed["w_all"], packed["b_all"])
    jax.block_until_ready(scores_bf16)
    np.testing.assert_allclose(np.asarray(scores_bf16), np.asarray(ref),
                               rtol=5e-2, atol=1e-2)

    print("KERNEL_OK")
</pallas_src>

<mosaic_0001>
module attributes {stable_mosaic.version = 11 : i64} {
  func.func @_gcn_net_fused_kernel(%arg0: memref<40x40xf32, #tpu.memory_space<vmem>>, %arg1: memref<8x40xf32, #tpu.memory_space<vmem>>, %arg2: memref<40x1xi32, #tpu.memory_space<vmem>>, %arg3: memref<32x32xf32, #tpu.memory_space<vmem>>, %arg4: memref<7x32x32xf32, #tpu.memory_space<vmem>>, %arg5: memref<7x1x32xf32, #tpu.memory_space<vmem>>, %arg6: memref<8x32xf32, #tpu.memory_space<vmem>>) attributes {dimension_semantics = [], scalar_prefetch = 0 : i64, scratch_operands = 0 : i64, tpu.core_type = #tpu.core_type<tc>} {
    %c0 = arith.constant 0 : index
    %c0_0 = arith.constant 0 : index
    %0 = vector.load %arg2[%c0, %c0_0] : memref<40x1xi32, #tpu.memory_space<vmem>>, vector<40x1xi32>
    %1 = tpu.iota {dimensions = array<i32: 1>} : vector<40x32xi32>
    %2 = vector.broadcast %0 : vector<40x1xi32> to vector<40x32xi32>
    %3 = arith.cmpi eq, %1, %2 : vector<40x32xi32>
    %4 = arith.extui %3 : vector<40x32xi1> to vector<40x32xi32>
    %5 = arith.sitofp %4 : vector<40x32xi32> to vector<40x32xf32>
    %c0_1 = arith.constant 0 : index
    %c0_2 = arith.constant 0 : index
    %6 = vector.load %arg3[%c0_1, %c0_2] : memref<32x32xf32, #tpu.memory_space<vmem>>, vector<32x32xf32>
    %cst = arith.constant dense<0.000000e+00> : vector<40x32xf32>
    %7 = tpu.matmul %5, %6, %cst {dimension_numbers = #tpu.dot_dimension_numbers<[1], [0], [0], [1], [0, 0, 1, 1], [], []>} : vector<40x32xf32>, vector<32x32xf32>, vector<40x32xf32> -> vector<40x32xf32>
    %c0_3 = arith.constant 0 : index
    %c0_4 = arith.constant 0 : index
    %8 = vector.load %arg0[%c0_3, %c0_4] : memref<40x40xf32, #tpu.memory_space<vmem>>, vector<40x40xf32>
    %c0_5 = arith.constant 0 : index
    %c0_6 = arith.constant 0 : index
    %c0_7 = arith.constant 0 : index
    %9 = vector.load %arg4[%c0_5, %c0_6, %c0_7] : memref<7x32x32xf32, #tpu.memory_space<vmem>>, vector<1x32x32xf32>
    %10 = vector.shape_cast %9 : vector<1x32x32xf32> to vector<32x32xf32>
    %c0_8 = arith.constant 0 : index
    %c0_9 = arith.constant 0 : index
    %c0_10 = arith.constant 0 : index
    %11 = vector.load %arg5[%c0_8, %c0_9, %c0_10] : memref<7x1x32xf32, #tpu.memory_space<vmem>>, vector<1x1x32xf32>
    %12 = vector.shape_cast %11 : vector<1x1x32xf32> to vector<1x32xf32>
    %cst_11 = arith.constant dense<0.000000e+00> : vector<40x32xf32>
    %13 = tpu.matmul %8, %7, %cst_11 {dimension_numbers = #tpu.dot_dimension_numbers<[1], [0], [0], [1], [0, 0, 1, 1], [], []>} : vector<40x40xf32>, vector<40x32xf32>, vector<40x32xf32> -> vector<40x32xf32>
    %cst_12 = arith.constant dense<0.000000e+00> : vector<40x32xf32>
    %14 = tpu.matmul %13, %10, %cst_12 {dimension_numbers = #tpu.dot_dimension_numbers<[1], [0], [0], [1], [0, 0, 1, 1], [], []>} : vector<40x32xf32>, vector<32x32xf32>, vector<40x32xf32> -> vector<40x32xf32>
    %15 = vector.broadcast %12 : vector<1x32xf32> to vector<40x32xf32>
    %16 = arith.addf %14, %15 : vector<40x32xf32>
    %cst_13 = arith.constant 0.000000e+00 : f32
    %17 = vector.broadcast %cst_13 : f32 to vector<40x32xf32>
    %18 = arith.maximumf %16, %17 : vector<40x32xf32>
    %19 = arith.addf %7, %18 : vector<40x32xf32>
    %c1 = arith.constant 1 : index
    %c0_14 = arith.constant 0 : index
    %c0_15 = arith.constant 0 : index
    %20 = vector.load %arg4[%c1, %c0_14, %c0_15] : memref<7x32x32xf32, #tpu.memory_space<vmem>>, vector<1x32x32xf32>
    %21 = vector.shape_cast %20 : vector<1x32x32xf32> to vector<32x32xf32>
    %c1_16 = arith.constant 1 : index
    %c0_17 = arith.constant 0 : index
    %c0_18 = arith.constant 0 : index
    %22 = vector.load %arg5[%c1_16, %c0_17, %c0_18] : memref<7x1x32xf32, #tpu.memory_space<vmem>>, vector<1x1x32xf32>
    %23 = vector.shape_cast %22 : vector<1x1x32xf32> to vector<1x32xf32>
    %cst_19 = arith.constant dense<0.000000e+00> : vector<40x32xf32>
    %24 = tpu.matmul %8, %19, %cst_19 {dimension_numbers = #tpu.dot_dimension_numbers<[1], [0], [0], [1], [0, 0, 1, 1], [], []>} : vector<40x40xf32>, vector<40x32xf32>, vector<40x32xf32> -> vector<40x32xf32>
    %cst_20 = arith.constant dense<0.000000e+00> : vector<40x32xf32>
    %25 = tpu.matmul %24, %21, %cst_20 {dimension_numbers = #tpu.dot_dimension_numbers<[1], [0], [0], [1], [0, 0, 1, 1], [], []>} : vector<40x32xf32>, vector<32x32xf32>, vector<40x32xf32> -> vector<40x32xf32>
    %26 = vector.broadcast %23 : vector<1x32xf32> to vector<40x32xf32>
    %27 = arith.addf %25, %26 : vector<40x32xf32>
    %cst_21 = arith.constant 0.000000e+00 : f32
    %28 = vector.broadcast %cst_21 : f32 to vector<40x32xf32>
    %29 = arith.maximumf %27, %28 : vector<40x32xf32>
    %30 = arith.addf %19, %29 : vector<40x32xf32>
    %c2 = arith.constant 2 : index
    %c0_22 = arith.constant 0 : index
    %c0_23 = arith.constant 0 : index
    %31 = vector.load %arg4[%c2, %c0_22, %c0_23] : memref<7x32x32xf32, #tpu.memory_space<vmem>>, vector<1x32x32xf32>
    %32 = vector.shape_cast %31 : vector<1x32x32xf32> to vector<32x32xf32>
    %c2_24 = arith.constant 2 : index
    %c0_25 = arith.constant 0 : index
    %c0_26 = arith.constant 0 : index
    %33 = vector.load %arg5[%c2_24, %c0_25, %c0_26] : memref<7x1x32xf32, #tpu.memory_space<vmem>>, vector<1x1x32xf32>
    %34 = vector.shape_cast %33 : vector<1x1x32xf32> to vector<1x32xf32>
    %cst_27 = arith.constant dense<0.000000e+00> : vector<40x32xf32>
    %35 = tpu.matmul %8, %30, %cst_27 {dimension_numbers = #tpu.dot_dimension_numbers<[1], [0], [0], [1], [0, 0, 1, 1], [], []>} : vector<40x40xf32>, vector<40x32xf32>, vector<40x32xf32> -> vector<40x32xf32>
    %cst_28 = arith.constant dense<0.000000e+00> : vector<40x32xf32>
    %36 = tpu.matmul %35, %32, %cst_28 {dimension_numbers = #tpu.dot_dimension_numbers<[1], [0], [0], [1], [0, 0, 1, 1], [], []>} : vector<40x32xf32>, vector<32x32xf32>, vector<40x32xf32> -> vector<40x32xf32>
    %37 = vector.broadcast %34 : vector<1x32xf32> to vector<40x32xf32>
    %38 = arith.addf %36, %37 : vector<40x32xf32>
    %cst_29 = arith.constant 0.000000e+00 : f32
    %39 = vector.broadcast %cst_29 : f32 to vector<40x32xf32>
    %40 = arith.maximumf %38, %39 : vector<40x32xf32>
    %41 = arith.addf %30, %40 : vector<40x32xf32>
    %c3 = arith.constant 3 : index
    %c0_30 = arith.constant 0 : index
    %c0_31 = arith.constant 0 : index
    %42 = vector.load %arg4[%c3, %c0_30, %c0_31] : memref<7x32x32xf32, #tpu.memory_space<vmem>>, vector<1x32x32xf32>
    %43 = vector.shape_cast %42 : vector<1x32x32xf32> to vector<32x32xf32>
    %c3_32 = arith.constant 3 : index
    %c0_33 = arith.constant 0 : index
    %c0_34 = arith.constant 0 : index
    %44 = vector.load %arg5[%c3_32, %c0_33, %c0_34] : memref<7x1x32xf32, #tpu.memory_space<vmem>>, vector<1x1x32xf32>
    %45 = vector.shape_cast %44 : vector<1x1x32xf32> to vector<1x32xf32>
    %cst_35 = arith.constant dense<0.000000e+00> : vector<40x32xf32>
    %46 = tpu.matmul %8, %41, %cst_35 {dimension_numbers = #tpu.dot_dimension_numbers<[1], [0], [0], [1], [0, 0, 1, 1], [], []>} : vector<40x40xf32>, vector<40x32xf32>, vector<40x32xf32> -> vector<40x32xf32>
    %cst_36 = arith.constant dense<0.000000e+00> : vector<40x32xf32>
    %47 = tpu.matmul %46, %43, %cst_36 {dimension_numbers = #tpu.dot_dimension_numbers<[1], [0], [0], [1], [0, 0, 1, 1], [], []>} : vector<40x32xf32>, vector<32x32xf32>, vector<40x32xf32> -> vector<40x32xf32>
    %48 = vector.broadcast %45 : vector<1x32xf32> to vector<40x32xf32>
    %49 = arith.addf %47, %48 : vector<40x32xf32>
    %cst_37 = arith.constant 0.000000e+00 : f32
    %50 = vector.broadcast %cst_37 : f32 to vector<40x32xf32>
    %51 = arith.maximumf %49, %50 : vector<40x32xf32>
    %52 = arith.addf %41, %51 : vector<40x32xf32>
    %c0_38 = arith.constant 0 : index
    %c0_39 = arith.constant 0 : index
    %53 = vector.load %arg1[%c0_38, %c0_39] : memref<8x40xf32, #tpu.memory_space<vmem>>, vector<8x40xf32>
    %cst_40 = arith.constant dense<0.000000e+00> : vector<8x32xf32>
    %54 = tpu.matmul %53, %52, %cst_40 {dimension_numbers = #tpu.dot_dimension_numbers<[1], [0], [0], [1], [0, 0, 1, 1], [], []>} : vector<8x40xf32>, vector<40x32xf32>, vector<8x32xf32> -> vector<8x32xf32>
    %c4 = arith.constant 4 : index
    %c0_41 = arith.constant 0 : index
    %c0_42 = arith.constant 0 : index
    %55 = vector.load %arg4[%c4, %c0_41, %c0_42] : memref<7x32x32xf32, #tpu.memory_space<vmem>>, vector<1x32x32xf32>
    %56 = vector.shape_cast %55 : vector<1x32x32xf32> to vector<32x32xf32>
    %c4_43 = arith.constant 4 : index
    %c0_44 = arith.constant 0 : index
    %c0_45 = arith.constant 0 : index
    %57 = vector.load %arg5[%c4_43, %c0_44, %c0_45] : memref<7x1x32xf32, #tpu.memory_space<vmem>>, vector<1x1x32xf32>
    %58 = vector.shape_cast %57 : vector<1x1x32xf32> to vector<1x32xf32>
    %cst_46 = arith.constant dense<0.000000e+00> : vector<8x32xf32>
    %59 = tpu.matmul %54, %56, %cst_46 {dimension_numbers = #tpu.dot_dimension_numbers<[1], [0], [0], [1], [0, 0, 1, 1], [], []>} : vector<8x32xf32>, vector<32x32xf32>, vector<8x32xf32> -> vector<8x32xf32>
    %60 = vector.broadcast %58 : vector<1x32xf32> to vector<8x32xf32>
    %61 = arith.addf %59, %60 : vector<8x32xf32>
    %cst_47 = arith.constant 0.000000e+00 : f32
    %62 = vector.broadcast %cst_47 : f32 to vector<8x32xf32>
    %63 = arith.maximumf %61, %62 : vector<8x32xf32>
    %c5 = arith.constant 5 : index
    %c0_48 = arith.constant 0 : index
    %c0_49 = arith.constant 0 : index
    %64 = vector.load %arg4[%c5, %c0_48, %c0_49] : memref<7x32x32xf32, #tpu.memory_space<vmem>>, vector<1x32x32xf32>
    %65 = vector.shape_cast %64 : vector<1x32x32xf32> to vector<32x32xf32>
    %c5_50 = arith.constant 5 : index
    %c0_51 = arith.constant 0 : index
    %c0_52 = arith.constant 0 : index
    %66 = vector.load %arg5[%c5_50, %c0_51, %c0_52] : memref<7x1x32xf32, #tpu.memory_space<vmem>>, vector<1x1x32xf32>
    %67 = vector.shape_cast %66 : vector<1x1x32xf32> to vector<1x32xf32>
    %cst_53 = arith.constant dense<0.000000e+00> : vector<8x32xf32>
    %68 = tpu.matmul %63, %65, %cst_53 {dimension_numbers = #tpu.dot_dimension_numbers<[1], [0], [0], [1], [0, 0, 1, 1], [], []>} : vector<8x32xf32>, vector<32x32xf32>, vector<8x32xf32> -> vector<8x32xf32>
    %69 = vector.broadcast %67 : vector<1x32xf32> to vector<8x32xf32>
    %70 = arith.addf %68, %69 : vector<8x32xf32>
    %cst_54 = arith.constant 0.000000e+00 : f32
    %71 = vector.broadcast %cst_54 : f32 to vector<8x32xf32>
    %72 = arith.maximumf %70, %71 : vector<8x32xf32>
    %c6 = arith.constant 6 : index
    %c0_55 = arith.constant 0 : index
    %c0_56 = arith.constant 0 : index
    %73 = vector.load %arg4[%c6, %c0_55, %c0_56] : memref<7x32x32xf32, #tpu.memory_space<vmem>>, vector<1x32x32xf32>
    %74 = vector.shape_cast %73 : vector<1x32x32xf32> to vector<32x32xf32>
    %c6_57 = arith.constant 6 : index
    %c0_58 = arith.constant 0 : index
    %c0_59 = arith.constant 0 : index
    %75 = vector.load %arg5[%c6_57, %c0_58, %c0_59] : memref<7x1x32xf32, #tpu.memory_space<vmem>>, vector<1x1x32xf32>
    %76 = vector.shape_cast %75 : vector<1x1x32xf32> to vector<1x32xf32>
    %cst_60 = arith.constant dense<0.000000e+00> : vector<8x32xf32>
    %77 = tpu.matmul %72, %74, %cst_60 {dimension_numbers = #tpu.dot_dimension_numbers<[1], [0], [0], [1], [0, 0, 1, 1], [], []>} : vector<8x32xf32>, vector<32x32xf32>, vector<8x32xf32> -> vector<8x32xf32>
    %78 = vector.broadcast %76 : vector<1x32xf32> to vector<8x32xf32>
    %79 = arith.addf %77, %78 : vector<8x32xf32>
    %c0_61 = arith.constant 0 : index
    %c0_62 = arith.constant 0 : index
    %80 = vector.load %arg6[%c0_61, %c0_62] : memref<8x32xf32, #tpu.memory_space<vmem>>, vector<8x32xf32>
    tpu.vector_store %arg6[%c0_61, %c0_62], %79 {strides = array<i32>} : memref<8x32xf32, #tpu.memory_space<vmem>>, vector<8x32xf32>,
    return
  }
}

</mosaic_0001>

<llo_original>
// kernel: forward.1
$region0: #{forward.1}
  #allocation0 [shape = 'u32[]', space=smem, size = 0x4, offset = 0x4, fixed_abs, tag = 'smem constant byte address 0x4 - core index']
  #allocation1 [shape = 'u32[72,128]{1,0:T(1,128)}', space=vmem, size = 0x9000, scoped, tag = 'internal scratch']
  %s0 = inlined_call_operand.vmem [shape: f32[40,40], index: 0, kind: input, shape index: {}]
  %s1 = inlined_call_operand.hbm [shape: f32[8,40], index: 1, kind: input, shape index: {}]
  %s2 = inlined_call_operand.vmem [shape: s32[40,1], index: 2, kind: input, shape index: {}]
  %s3 = inlined_call_operand.hbm [shape: f32[32,32], index: 3, kind: input, shape index: {}]
  %s4 = inlined_call_operand.hbm [shape: f32[7,32,32], index: 4, kind: input, shape index: {}]
  %s5 = inlined_call_operand.hbm [shape: f32[7,1,32], index: 5, kind: input, shape index: {}]
  %s6 = inlined_call_operand.vmem [shape: f32[8,32], index: 6, kind: output, shape index: {}]
  %s7 = sld [smem:[#allocation0]]
  $region50: #{forward.1} parent=0
    _
  %s9 = ssub.s32 1, %s7
  %s10 = scalar_select 0, %s9, %s7
  $region1: #{forward.1} parent=0
    #allocation2 [shape = 'u8[4096]{0}', space=vmem, size = 0x1000, scoped, tag = 'input window, operand 1, single buffered']
    #allocation3 [shape = 's32[1]{0}', space=sflag, size = 0x4, scoped, tag = 'scoped memory for forward.1']
    #allocation4 [shape = 'u8[16384]{0}', space=vmem, size = 0x4000, scoped, tag = 'input window, operand 3, single buffered']
    #allocation5 [shape = 's32[1]{0}', space=sflag, size = 0x4, scoped, tag = 'scoped memory for forward.1']
    #allocation6 [shape = 'u8[114688]{0}', space=vmem, size = 0x1c000, scoped, tag = 'input window, operand 4, single buffered']
    #allocation7 [shape = 'u8[3584]{0}', space=vmem, size = 0x1000, scoped, tag = 'input window, operand 5, single buffered']
    #allocation8 [shape = 's32[1]{0}', space=sflag, size = 0x4, scoped, tag = 'scoped memory for forward.1']
    %11 = vsyncpa [#allocation3], 0
    %12 = vsyncpa [#allocation5], 0
    %13 = vsyncpa [#allocation8], 0
    // Predicated region
    $region2: #{forward.1} parent=1 // pred_check
      _
    $region3: #{forward.1} parent=1 // pred_check_branch
      %15 = sbr.rel (0) target = $region5
    $region4: #{forward.1} parent=1 // pred_region
      _
    $region5: #{forward.1} parent=1 // pred_fallthru
      _
    // Predicated region
    $region6: #{forward.1} parent=1 // pred_check
      _
    $region7: #{forward.1} parent=1 // pred_check_branch
      %17 = sbr.rel (0) target = $region9
    $region8: #{forward.1} parent=1 // pred_region
      %19 = vsyncadd [#allocation3], 0
      %s21 = sshll.u32 %s1, 4
      %s22 = int_to_ptr.hbm [resolvable:$true] %s21
      %s23 = sshll.u32 [#allocation2], 4
      %s24 = int_to_ptr.vmem [resolvable:$true] %s23
      %26 = dma.hbm_to_vmem [thread:$0]  %s22, 128, %s24, [#allocation3]
    $region9: #{forward.1} parent=1 // pred_fallthru
      _
    // Predicated region
    $region10: #{forward.1} parent=1 // pred_check
      _
    $region11: #{forward.1} parent=1 // pred_check_branch
      %28 = sbr.rel (0) target = $region13
    $region12: #{forward.1} parent=1 // pred_region
      _
    $region13: #{forward.1} parent=1 // pred_fallthru
      _
    // Predicated region
    $region14: #{forward.1} parent=1 // pred_check
      _
    $region15: #{forward.1} parent=1 // pred_check_branch
      %30 = sbr.rel (0) target = $region17
    $region16: #{forward.1} parent=1 // pred_region
      %32 = vsyncadd [#allocation5], 0
      %s33 = sshll.u32 %s3, 4
      %s34 = int_to_ptr.hbm [resolvable:$true] %s33
      %s35 = sshll.u32 [#allocation4], 4
      %s36 = int_to_ptr.vmem [resolvable:$true] %s35
      %41 = dma.hbm_to_vmem [thread:$0]  %s34, 512, %s36, [#allocation5], 128, 128, 8
    $region17: #{forward.1} parent=1 // pred_fallthru
      _
    // Predicated region
    $region18: #{forward.1} parent=1 // pred_check
      _
    $region19: #{forward.1} parent=1 // pred_check_branch
      %43 = sbr.rel (0) target = $region21
    $region20: #{forward.1} parent=1 // pred_region
      %45 = vsyncadd [#allocation5], 0
      %s46 = sshll.u32 %s4, 4
      %s47 = int_to_ptr.hbm [resolvable:$true] %s46
      %s48 = sshll.u32 [#allocation6], 4
      %s49 = int_to_ptr.vmem [resolvable:$true] %s48
      %54 = dma.hbm_to_vmem [thread:$0]  %s47, 3584, %s49, [#allocation5], 128, 128, 8
    $region21: #{forward.1} parent=1 // pred_fallthru
      _
    // Predicated region
    $region22: #{forward.1} parent=1 // pred_check
      _
    $region23: #{forward.1} parent=1 // pred_check_branch
      %56 = sbr.rel (0) target = $region25
    $region24: #{forward.1} parent=1 // pred_region
      %58 = vsyncadd [#allocation8], 0
      %s59 = sshll.u32 %s5, 4
      %s60 = int_to_ptr.hbm [resolvable:$true] %s59
      %s61 = sshll.u32 [#allocation7], 4
      %s62 = int_to_ptr.vmem [resolvable:$true] %s61
      %67 = dma.hbm_to_vmem [thread:$0]  %s60, 112, %s62, [#allocation8], 16, 16, 1
    $region25: #{forward.1} parent=1 // pred_fallthru
      _
    // Predicated region
    $region26: #{forward.1} parent=1 // pred_check
      _
    $region27: #{forward.1} parent=1 // pred_check_branch
      %69 = sbr.rel (0) target = $region29
    $region28: #{forward.1} parent=1 // pred_region
      %71 = dma.done [#allocation3], 128
    $region29: #{forward.1} parent=1 // pred_fallthru
      _
    // Predicated region
    $region30: #{forward.1} parent=1 // pred_check
      _
    $region31: #{forward.1} parent=1 // pred_check_branch
      %73 = sbr.rel (0) target = $region33
    $region32: #{forward.1} parent=1 // pred_region
      %75 = dma.done [#allocation5], 512
    $region33: #{forward.1} parent=1 // pred_fallthru
      _
    // Predicated region
    $region34: #{forward.1} parent=1 // pred_check
      _
    $region35: #{forward.1} parent=1 // pred_check_branch
      %77 = sbr.rel (0) target = $region37
    $region36: #{forward.1} parent=1 // pred_region
      %79 = dma.done [#allocation5], 3584
    $region37: #{forward.1} parent=1 // pred_fallthru
      _
    // Predicated region
    $region38: #{forward.1} parent=1 // pred_check
      _
    $region39: #{forward.1} parent=1 // pred_check_branch
      %81 = sbr.rel (0) target = $region41
    $region40: #{forward.1} parent=1 // pred_region
      %83 = dma.done [#allocation8], 112
    $region41: #{forward.1} parent=1 // pred_fallthru
      _
    %v84 = vld [vmem:[%s2] sm:$0xff]
    %v85 = vld [vmem:[%s2 + $0x8] sm:$0xff]
    %v86 = vld [vmem:[%s2 + $0x10] sm:$0xff]
    %v87 = vld [vmem:[%s2 + $0x18] sm:$0xff]
    %v88 = vld [vmem:[%s2 + $0x20] sm:$0xff]
    %v89 = vlaneseq
    %v90 = vand.u32 %v89, 127
    %91 = vset.pattern.permute.xlu0 0
    %92 = vperm.xlu0 %91, %v84
    %v93 = vpop.permute.xlu0 %92
    %94 = vset.pattern.permute.xlu0 0
    %95 = vperm.xlu0 %94, %v85
    %v96 = vpop.permute.xlu0 %95
    %97 = vset.pattern.permute.xlu0 0
    %98 = vperm.xlu0 %97, %v86
    %v99 = vpop.permute.xlu0 %98
    %100 = vset.pattern.permute.xlu0 0
    %101 = vperm.xlu0 %100, %v87
    %v102 = vpop.permute.xlu0 %101
    %103 = vset.pattern.permute.xlu0 0
    %104 = vperm.xlu0 %103, %v88
    %v105 = vpop.permute.xlu0 %104
    %vm106 = vcmp.eq.s32.totalorder %v90, %v93
    %vm107 = vcmp.eq.s32.totalorder %v90, %v96
    %vm108 = vcmp.eq.s32.totalorder %v90, %v99
    %vm109 = vcmp.eq.s32.totalorder %v90, %v102
    %vm110 = vcmp.eq.s32.totalorder %v90, %v105
    %v111 = vsel %vm106, 1, 0
    %v112 = vsel %vm107, 1, 0
    %v113 = vsel %vm108, 1, 0
    %v114 = vsel %vm109, 1, 0
    %v115 = vsel %vm110, 1, 0
    %v116 = vcvt.s32.f32 %v111
    %v117 = vcvt.s32.f32 %v112
    %v118 = vcvt.s32.f32 %v113
    %v119 = vcvt.s32.f32 %v114
    %v120 = vcvt.s32.f32 %v115
    %v121 = vld [vmem:[#allocation4] sm:$0xff]
    %v122 = vld [vmem:[#allocation4 + $0x8] sm:$0xff]
    %v123 = vld [vmem:[#allocation4 + $0x10] sm:$0xff]
    %v124 = vld [vmem:[#allocation4 + $0x18] sm:$0xff]
    %vm125 = vcmask 261120
    %v127 = vsel %vm125, %v116, 0
    %v130 = vsel %vm125, %v117, 0
    %v133 = vsel %vm125, %v118, 0
    %v136 = vsel %vm125, %v119, 0
    %v139 = vsel %vm125, %v120, 0
    %141 = vmatpush.msra.mxu0 0.0
    %142 = vmatpush.msra.mxu0 0.0
    %143 = vmatpush.msra.mxu0 0.0
    %144 = vmatpush.msra.mxu0 0.0
    %145 = vmatpush.msra.mxu0 0.0
    %146 = vmatpush.msra.mxu0 0.0
    %147 = vmatpush.msra.mxu0 0.0
    %148 = vmatpush.msra.mxu0 0.0
    %149 = vmatpush.msra.mxu0 0.0
    %150 = vmatpush.msra.mxu0 0.0
    %151 = vmatpush.msra.mxu0 0.0
    %152 = vmatpush.msra.mxu0 0.0
    %153 = vmatpush.msra.mxu0 %v124
    %154 = vmatpush.msra.mxu0 %v123
    %155 = vmatpush.msra.mxu0 %v122
    %156 = vmatpush.msra.mxu0 %v121
    %157 = vmatmul.f32.gmra.mxu0 %v127
    %v158 = vpop.f32.mrf.mxu0
    %v159 = vadd.f32 0.0, %v158
    %160 = vmatmul.f32.gmra.mxu0 %v130
    %v161 = vpop.f32.mrf.mxu0
    %v162 = vadd.f32 0.0, %v161
    %163 = vmatmul.f32.gmra.mxu0 %v133
    %v164 = vpop.f32.mrf.mxu0
    %v165 = vadd.f32 0.0, %v164
    %166 = vmatmul.f32.gmra.mxu0 %v136
    %v167 = vpop.f32.mrf.mxu0
    %v168 = vadd.f32 0.0, %v167
    %169 = vmatmul.f32.gmra.mxu0 %v139
    %v170 = vpop.f32.mrf.mxu0
    %v171 = vadd.f32 0.0, %v170
    %172 = vdwg.mxu0
    %v173 = vld [vmem:[%s0] sm:$0xff]
    %v174 = vld [vmem:[%s0 + $0x8] sm:$0xff]
    %v175 = vld [vmem:[%s0 + $0x10] sm:$0xff]
    %v176 = vld [vmem:[%s0 + $0x18] sm:$0xff]
    %v177 = vld [vmem:[%s0 + $0x20] sm:$0xff]
    %v178 = vld [vmem:[#allocation6] sm:$0xff]
    %v179 = vld [vmem:[#allocation6 + $0x8] sm:$0xff]
    %v180 = vld [vmem:[#allocation6 + $0x10] sm:$0xff]
    %v181 = vld [vmem:[#allocation6 + $0x18] sm:$0xff]
    %v182 = vld [vmem:[#allocation7] sm:$0x1]
    %vm183 = vcmask 326656
    %v185 = vsel %vm183, %v173, 0
    %v188 = vsel %vm183, %v174, 0
    %v191 = vsel %vm183, %v175, 0
    %v194 = vsel %vm183, %v176, 0
    %v197 = vsel %vm183, %v177, 0
    %199 = vmatpush.msra.mxu0 0.0
    %200 = vmatpush.msra.mxu0 0.0
    %201 = vmatpush.msra.mxu0 0.0
    %202 = vmatpush.msra.mxu0 0.0
    %203 = vmatpush.msra.mxu0 0.0
    %204 = vmatpush.msra.mxu0 0.0
    %205 = vmatpush.msra.mxu0 0.0
    %206 = vmatpush.msra.mxu0 0.0
    %207 = vmatpush.msra.mxu0 0.0
    %208 = vmatpush.msra.mxu0 0.0
    %209 = vmatpush.msra.mxu0 0.0
    %210 = vmatpush.msra.mxu0 %v171
    %211 = vmatpush.msra.mxu0 %v168
    %212 = vmatpush.msra.mxu0 %v165
    %213 = vmatpush.msra.mxu0 %v162
    %214 = vmatpush.msra.mxu0 %v159
    %215 = vmatmul.f32.gmra.mxu0 %v185
    %v216 = vpop.f32.mrf.mxu0
    %v217 = vadd.f32 0.0, %v216
    %218 = vmatmul.f32.gmra.mxu0 %v188
    %v219 = vpop.f32.mrf.mxu0
    %v220 = vadd.f32 0.0, %v219
    %221 = vmatmul.f32.gmra.mxu0 %v191
    %v222 = vpop.f32.mrf.mxu0
    %v223 = vadd.f32 0.0, %v222
    %224 = vmatmul.f32.gmra.mxu0 %v194
    %v225 = vpop.f32.mrf.mxu0
    %v226 = vadd.f32 0.0, %v225
    %227 = vmatmul.f32.gmra.mxu0 %v197
    %v228 = vpop.f32.mrf.mxu0
    %v229 = vadd.f32 0.0, %v228
    %230 = vdwg.mxu0
    %v232 = vperm.slane %v182, 0
    %v235 = vsel %vm125, %v217, 0
    %v238 = vsel %vm125, %v220, 0
    %v241 = vsel %vm125, %v223, 0
    %v244 = vsel %vm125, %v226, 0
    %v247 = vsel %vm125, %v229, 0
    %249 = vmatpush.msra.mxu0 0.0
    %250 = vmatpush.msra.mxu0 0.0
    %251 = vmatpush.msra.mxu0 0.0
    %252 = vmatpush.msra.mxu0 0.0
    %253 = vmatpush.msra.mxu0 0.0
    %254 = vmatpush.msra.mxu0 0.0
    %255 = vmatpush.msra.mxu0 0.0
    %256 = vmatpush.msra.mxu0 0.0
    %257 = vmatpush.msra.mxu0 0.0
    %258 = vmatpush.msra.mxu0 0.0
    %259 = vmatpush.msra.mxu0 0.0
    %260 = vmatpush.msra.mxu0 0.0
    %261 = vmatpush.msra.mxu0 %v181
    %262 = vmatpush.msra.mxu0 %v180
    %263 = vmatpush.msra.mxu0 %v179
    %264 = vmatpush.msra.mxu0 %v178
    %265 = vmatmul.f32.gmra.mxu0 %v235
    %v266 = vpop.f32.mrf.mxu0
    %v267 = vadd.f32 %v232, %v266
    %268 = vmatmul.f32.gmra.mxu0 %v238
    %v269 = vpop.f32.mrf.mxu0
    %v270 = vadd.f32 %v232, %v269
    %271 = vmatmul.f32.gmra.mxu0 %v241
    %v272 = vpop.f32.mrf.mxu0
    %v273 = vadd.f32 %v232, %v272
    %274 = vmatmul.f32.gmra.mxu0 %v244
    %v275 = vpop.f32.mrf.mxu0
    %v276 = vadd.f32 %v232, %v275
    %277 = vmatmul.f32.gmra.mxu0 %v247
    %v278 = vpop.f32.mrf.mxu0
    %v279 = vadd.f32 %v232, %v278
    %280 = vdwg.mxu0
    %v281 = vmax.f32 %v267, 0.0
    %v282 = vmax.f32 %v270, 0.0
    %v283 = vmax.f32 %v273, 0.0
    %v284 = vmax.f32 %v276, 0.0
    %v285 = vmax.f32 %v279, 0.0
    %v286 = vadd.f32 %v159, %v281
    %v287 = vadd.f32 %v162, %v282
    %v288 = vadd.f32 %v165, %v283
    %v289 = vadd.f32 %v168, %v284
    %v290 = vadd.f32 %v171, %v285
    %s291 = scalar_lea.vmem [#allocation6], 32
    %v292 = vld [vmem:[%s291] sm:$0xff]
    %v293 = vld [vmem:[%s291 + $0x8] sm:$0xff]
    %v294 = vld [vmem:[%s291 + $0x10] sm:$0xff]
    %v295 = vld [vmem:[%s291 + $0x18] sm:$0xff]
    %s296 = scalar_lea.vmem [#allocation7], 1
    %v297 = vld [vmem:[%s296] sm:$0x1]
    %298 = vmatpush.msra.mxu0 0.0
    %299 = vmatpush.msra.mxu0 0.0
    %300 = vmatpush.msra.mxu0 0.0
    %301 = vmatpush.msra.mxu0 0.0
    %302 = vmatpush.msra.mxu0 0.0
    %303 = vmatpush.msra.mxu0 0.0
    %304 = vmatpush.msra.mxu0 0.0
    %305 = vmatpush.msra.mxu0 0.0
    %306 = vmatpush.msra.mxu0 0.0
    %307 = vmatpush.msra.mxu0 0.0
    %308 = vmatpush.msra.mxu0 0.0
    %309 = vmatpush.msra.mxu0 %v290
    %310 = vmatpush.msra.mxu0 %v289
    %311 = vmatpush.msra.mxu0 %v288
    %312 = vmatpush.msra.mxu0 %v287
    %313 = vmatpush.msra.mxu0 %v286
    %314 = vmatmul.f32.gmra.mxu0 %v185
    %v315 = vpop.f32.mrf.mxu0
    %v316 = vadd.f32 0.0, %v315
    %317 = vmatmul.f32.gmra.mxu0 %v188
    %v318 = vpop.f32.mrf.mxu0
    %v319 = vadd.f32 0.0, %v318
    %320 = vmatmul.f32.gmra.mxu0 %v191
    %v321 = vpop.f32.mrf.mxu0
    %v322 = vadd.f32 0.0, %v321
    %323 = vmatmul.f32.gmra.mxu0 %v194
    %v324 = vpop.f32.mrf.mxu0
    %v325 = vadd.f32 0.0, %v324
    %326 = vmatmul.f32.gmra.mxu0 %v197
    %v327 = vpop.f32.mrf.mxu0
    %v328 = vadd.f32 0.0, %v327
    %329 = vdwg.mxu0
    %v331 = vperm.slane %v297, 0
    %v334 = vsel %vm125, %v316, 0
    %v337 = vsel %vm125, %v319, 0
    %v340 = vsel %vm125, %v322, 0
    %v343 = vsel %vm125, %v325, 0
    %v346 = vsel %vm125, %v328, 0
    %348 = vmatpush.msra.mxu0 0.0
    %349 = vmatpush.msra.mxu0 0.0
    %350 = vmatpush.msra.mxu0 0.0
    %351 = vmatpush.msra.mxu0 0.0
    %352 = vmatpush.msra.mxu0 0.0
    %353 = vmatpush.msra.mxu0 0.0
    %354 = vmatpush.msra.mxu0 0.0
    %355 = vmatpush.msra.mxu0 0.0
    %356 = vmatpush.msra.mxu0 0.0
    %357 = vmatpush.msra.mxu0 0.0
    %358 = vmatpush.msra.mxu0 0.0
    %359 = vmatpush.msra.mxu0 0.0
    %360 = vmatpush.msra.mxu0 %v295
    %361 = vmatpush.msra.mxu0 %v294
    %362 = vmatpush.msra.mxu0 %v293
    %363 = vmatpush.msra.mxu0 %v292
    %364 = vmatmul.f32.gmra.mxu0 %v334
    %v365 = vpop.f32.mrf.mxu0
    %v366 = vadd.f32 %v331, %v365
    %367 = vmatmul.f32.gmra.mxu0 %v337
    %v368 = vpop.f32.mrf.mxu0
    %v369 = vadd.f32 %v331, %v368
    %370 = vmatmul.f32.gmra.mxu0 %v340
    %v371 = vpop.f32.mrf.mxu0
    %v372 = vadd.f32 %v331, %v371
    %373 = vmatmul.f32.gmra.mxu0 %v343
    %v374 = vpop.f32.mrf.mxu0
    %v375 = vadd.f32 %v331, %v374
    %376 = vmatmul.f32.gmra.mxu0 %v346
    %v377 = vpop.f32.mrf.mxu0
    %v378 = vadd.f32 %v331, %v377
    %379 = vdwg.mxu0
    %v380 = vmax.f32 %v366, 0.0
    %v381 = vmax.f32 %v369, 0.0
    %v382 = vmax.f32 %v372, 0.0
    %v383 = vmax.f32 %v375, 0.0
    %v384 = vmax.f32 %v378, 0.0
    %v385 = vadd.f32 %v286, %v380
    %v386 = vadd.f32 %v287, %v381
    %v387 = vadd.f32 %v288, %v382
    %v388 = vadd.f32 %v289, %v383
    %v389 = vadd.f32 %v290, %v384
    %s390 = scalar_lea.vmem [#allocation6], 64
    %v391 = vld [vmem:[%s390] sm:$0xff]
    %v392 = vld [vmem:[%s390 + $0x8] sm:$0xff]
    %v393 = vld [vmem:[%s390 + $0x10] sm:$0xff]
    %v394 = vld [vmem:[%s390 + $0x18] sm:$0xff]
    %s395 = scalar_lea.vmem [#allocation7], 2
    %v396 = vld [vmem:[%s395] sm:$0x1]
    %397 = vmatpush.msra.mxu0 0.0
    %398 = vmatpush.msra.mxu0 0.0
    %399 = vmatpush.msra.mxu0 0.0
    %400 = vmatpush.msra.mxu0 0.0
    %401 = vmatpush.msra.mxu0 0.0
    %402 = vmatpush.msra.mxu0 0.0
    %403 = vmatpush.msra.mxu0 0.0
    %404 = vmatpush.msra.mxu0 0.0
    %405 = vmatpush.msra.mxu0 0.0
    %406 = vmatpush.msra.mxu0 0.0
    %407 = vmatpush.msra.mxu0 0.0
    %408 = vmatpush.msra.mxu0 %v389
    %409 = vmatpush.msra.mxu0 %v388
    %410 = vmatpush.msra.mxu0 %v387
    %411 = vmatpush.msra.mxu0 %v386
    %412 = vmatpush.msra.mxu0 %v385
    %413 = vmatmul.f32.gmra.mxu0 %v185
    %v414 = vpop.f32.mrf.mxu0
    %v415 = vadd.f32 0.0, %v414
    %416 = vmatmul.f32.gmra.mxu0 %v188
    %v417 = vpop.f32.mrf.mxu0
    %v418 = vadd.f32 0.0, %v417
    %419 = vmatmul.f32.gmra.mxu0 %v191
    %v420 = vpop.f32.mrf.mxu0
    %v421 = vadd.f32 0.0, %v420
    %422 = vmatmul.f32.gmra.mxu0 %v194
    %v423 = vpop.f32.mrf.mxu0
    %v424 = vadd.f32 0.0, %v423
    %425 = vmatmul.f32.gmra.mxu0 %v197
    %v426 = vpop.f32.mrf.mxu0
    %v427 = vadd.f32 0.0, %v426
    %428 = vdwg.mxu0
    %v430 = vperm.slane %v396, 0
    %v433 = vsel %vm125, %v415, 0
    %v436 = vsel %vm125, %v418, 0
    %v439 = vsel %vm125, %v421, 0
    %v442 = vsel %vm125, %v424, 0
    %v445 = vsel %vm125, %v427, 0
    %447 = vmatpush.msra.mxu0 0.0
    %448 = vmatpush.msra.mxu0 0.0
    %449 = vmatpush.msra.mxu0 0.0
    %450 = vmatpush.msra.mxu0 0.0
    %451 = vmatpush.msra.mxu0 0.0
    %452 = vmatpush.msra.mxu0 0.0
    %453 = vmatpush.msra.mxu0 0.0
    %454 = vmatpush.msra.mxu0 0.0
    %455 = vmatpush.msra.mxu0 0.0
    %456 = vmatpush.msra.mxu0 0.0
    %457 = vmatpush.msra.mxu0 0.0
    %458 = vmatpush.msra.mxu0 0.0
    %459 = vmatpush.msra.mxu0 %v394
    %460 = vmatpush.msra.mxu0 %v393
    %461 = vmatpush.msra.mxu0 %v392
    %462 = vmatpush.msra.mxu0 %v391
    %463 = vmatmul.f32.gmra.mxu0 %v433
    %v464 = vpop.f32.mrf.mxu0
    %v465 = vadd.f32 %v430, %v464
    %466 = vmatmul.f32.gmra.mxu0 %v436
    %v467 = vpop.f32.mrf.mxu0
    %v468 = vadd.f32 %v430, %v467
    %469 = vmatmul.f32.gmra.mxu0 %v439
    %v470 = vpop.f32.mrf.mxu0
    %v471 = vadd.f32 %v430, %v470
    %472 = vmatmul.f32.gmra.mxu0 %v442
    %v473 = vpop.f32.mrf.mxu0
    %v474 = vadd.f32 %v430, %v473
    %475 = vmatmul.f32.gmra.mxu0 %v445
    %v476 = vpop.f32.mrf.mxu0
    %v477 = vadd.f32 %v430, %v476
    %478 = vdwg.mxu0
    %v479 = vmax.f32 %v465, 0.0
    %v480 = vmax.f32 %v468, 0.0
    %v481 = vmax.f32 %v471, 0.0
    %v482 = vmax.f32 %v474, 0.0
    %v483 = vmax.f32 %v477, 0.0
    %v484 = vadd.f32 %v385, %v479
    %v485 = vadd.f32 %v386, %v480
    %v486 = vadd.f32 %v387, %v481
    %v487 = vadd.f32 %v388, %v482
    %v488 = vadd.f32 %v389, %v483
    %s489 = scalar_lea.vmem [#allocation6], 96
    %v490 = vld [vmem:[%s489] sm:$0xff]
    %v491 = vld [vmem:[%s489 + $0x8] sm:$0xff]
    %v492 = vld [vmem:[%s489 + $0x10] sm:$0xff]
    %v493 = vld [vmem:[%s489 + $0x18] sm:$0xff]
    %s494 = scalar_lea.vmem [#allocation7], 3
    %v495 = vld [vmem:[%s494] sm:$0x1]
    %496 = vmatpush.msra.mxu0 0.0
    %497 = vmatpush.msra.mxu0 0.0
    %498 = vmatpush.msra.mxu0 0.0
    %499 = vmatpush.msra.mxu0 0.0
    %500 = vmatpush.msra.mxu0 0.0
    %501 = vmatpush.msra.mxu0 0.0
    %502 = vmatpush.msra.mxu0 0.0
    %503 = vmatpush.msra.mxu0 0.0
    %504 = vmatpush.msra.mxu0 0.0
    %505 = vmatpush.msra.mxu0 0.0
    %506 = vmatpush.msra.mxu0 0.0
    %507 = vmatpush.msra.mxu0 %v488
    %508 = vmatpush.msra.mxu0 %v487
    %509 = vmatpush.msra.mxu0 %v486
    %510 = vmatpush.msra.mxu0 %v485
    %511 = vmatpush.msra.mxu0 %v484
    %512 = vmatmul.f32.gmra.mxu0 %v185
    %v513 = vpop.f32.mrf.mxu0
    %v514 = vadd.f32 0.0, %v513
    %515 = vmatmul.f32.gmra.mxu0 %v188
    %v516 = vpop.f32.mrf.mxu0
    %v517 = vadd.f32 0.0, %v516
    %518 = vmatmul.f32.gmra.mxu0 %v191
    %v519 = vpop.f32.mrf.mxu0
    %v520 = vadd.f32 0.0, %v519
    %521 = vmatmul.f32.gmra.mxu0 %v194
    %v522 = vpop.f32.mrf.mxu0
    %v523 = vadd.f32 0.0, %v522
    %524 = vmatmul.f32.gmra.mxu0 %v197
    %v525 = vpop.f32.mrf.mxu0
    %v526 = vadd.f32 0.0, %v525
    %527 = vdwg.mxu0
    %v529 = vperm.slane %v495, 0
    %v532 = vsel %vm125, %v514, 0
    %v535 = vsel %vm125, %v517, 0
    %v538 = vsel %vm125, %v520, 0
    %v541 = vsel %vm125, %v523, 0
    %v544 = vsel %vm125, %v526, 0
    %546 = vmatpush.msra.mxu0 0.0
    %547 = vmatpush.msra.mxu0 0.0
    %548 = vmatpush.msra.mxu0 0.0
    %549 = vmatpush.msra.mxu0 0.0
    %550 = vmatpush.msra.mxu0 0.0
    %551 = vmatpush.msra.mxu0 0.0
    %552 = vmatpush.msra.mxu0 0.0
    %553 = vmatpush.msra.mxu0 0.0
    %554 = vmatpush.msra.mxu0 0.0
    %555 = vmatpush.msra.mxu0 0.0
    %556 = vmatpush.msra.mxu0 0.0
    %557 = vmatpush.msra.mxu0 0.0
    %558 = vmatpush.msra.mxu0 %v493
    %559 = vmatpush.msra.mxu0 %v492
    %560 = vmatpush.msra.mxu0 %v491
    %561 = vmatpush.msra.mxu0 %v490
    %562 = vmatmul.f32.gmra.mxu0 %v532
    %v563 = vpop.f32.mrf.mxu0
    %v564 = vadd.f32 %v529, %v563
    %565 = vmatmul.f32.gmra.mxu0 %v535
    %v566 = vpop.f32.mrf.mxu0
    %v567 = vadd.f32 %v529, %v566
    %568 = vmatmul.f32.gmra.mxu0 %v538
    %v569 = vpop.f32.mrf.mxu0
    %v570 = vadd.f32 %v529, %v569
    %571 = vmatmul.f32.gmra.mxu0 %v541
    %v572 = vpop.f32.mrf.mxu0
    %v573 = vadd.f32 %v529, %v572
    %574 = vmatmul.f32.gmra.mxu0 %v544
    %v575 = vpop.f32.mrf.mxu0
    %v576 = vadd.f32 %v529, %v575
    %577 = vdwg.mxu0
    %v578 = vmax.f32 %v564, 0.0
    %v579 = vmax.f32 %v567, 0.0
    %v580 = vmax.f32 %v570, 0.0
    %v581 = vmax.f32 %v573, 0.0
    %v582 = vmax.f32 %v576, 0.0
    %v583 = vadd.f32 %v484, %v578
    %v584 = vadd.f32 %v485, %v579
    %v585 = vadd.f32 %v486, %v580
    %v586 = vadd.f32 %v487, %v581
    %v587 = vadd.f32 %v488, %v582
    %v588 = vld [vmem:[#allocation2] sm:$0xff]
    %v590 = vsel %vm183, %v588, 0
    %592 = vmatpush.msra.mxu0 0.0
    %593 = vmatpush.msra.mxu0 0.0
    %594 = vmatpush.msra.mxu0 0.0
    %595 = vmatpush.msra.mxu0 0.0
    %596 = vmatpush.msra.mxu0 0.0
    %597 = vmatpush.msra.mxu0 0.0
    %598 = vmatpush.msra.mxu0 0.0
    %599 = vmatpush.msra.mxu0 0.0
    %600 = vmatpush.msra.mxu0 0.0
    %601 = vmatpush.msra.mxu0 0.0
    %602 = vmatpush.msra.mxu0 0.0
    %603 = vmatpush.msra.mxu0 %v587
    %604 = vmatpush.msra.mxu0 %v586
    %605 = vmatpush.msra.mxu0 %v585
    %606 = vmatpush.msra.mxu0 %v584
    %607 = vmatpush.msra.mxu0 %v583
    %608 = vmatmul.f32.gmra.mxu0 %v590
    %v609 = vpop.f32.mrf.mxu0
    %v610 = vadd.f32 0.0, %v609
    %611 = vdwg.mxu0
    %s612 = scalar_lea.vmem [#allocation6], 128
    %v613 = vld [vmem:[%s612] sm:$0xff]
    %v614 = vld [vmem:[%s612 + $0x8] sm:$0xff]
    %v615 = vld [vmem:[%s612 + $0x10] sm:$0xff]
    %v616 = vld [vmem:[%s612 + $0x18] sm:$0xff]
    %s617 = scalar_lea.vmem [#allocation7], 4
    %v618 = vld [vmem:[%s617] sm:$0x1]
    %v620 = vperm.slane %v618, 0
    %v623 = vsel %vm125, %v610, 0
    %625 = vmatpush.msra.mxu0 0.0
    %626 = vmatpush.msra.mxu0 0.0
    %627 = vmatpush.msra.mxu0 0.0
    %628 = vmatpush.msra.mxu0 0.0
    %629 = vmatpush.msra.mxu0 0.0
    %630 = vmatpush.msra.mxu0 0.0
    %631 = vmatpush.msra.mxu0 0.0
    %632 = vmatpush.msra.mxu0 0.0
    %633 = vmatpush.msra.mxu0 0.0
    %634 = vmatpush.msra.mxu0 0.0
    %635 = vmatpush.msra.mxu0 0.0
    %636 = vmatpush.msra.mxu0 0.0
    %637 = vmatpush.msra.mxu0 %v616
    %638 = vmatpush.msra.mxu0 %v615
    %639 = vmatpush.msra.mxu0 %v614
    %640 = vmatpush.msra.mxu0 %v613
    %641 = vmatmul.f32.gmra.mxu0 %v623
    %v642 = vpop.f32.mrf.mxu0
    %v643 = vadd.f32 %v620, %v642
    %644 = vdwg.mxu0
    %v645 = vmax.f32 %v643, 0.0
    %s646 = scalar_lea.vmem [#allocation6], 160
    %v647 = vld [vmem:[%s646] sm:$0xff]
    %v648 = vld [vmem:[%s646 + $0x8] sm:$0xff]
    %v649 = vld [vmem:[%s646 + $0x10] sm:$0xff]
    %v650 = vld [vmem:[%s646 + $0x18] sm:$0xff]
    %s651 = scalar_lea.vmem [#allocation7], 5
    %v652 = vld [vmem:[%s651] sm:$0x1]
    %v654 = vperm.slane %v652, 0
    %v657 = vsel %vm125, %v645, 0
    %659 = vmatpush.msra.mxu0 0.0
    %660 = vmatpush.msra.mxu0 0.0
    %661 = vmatpush.msra.mxu0 0.0
    %662 = vmatpush.msra.mxu0 0.0
    %663 = vmatpush.msra.mxu0 0.0
    %664 = vmatpush.msra.mxu0 0.0
    %665 = vmatpush.msra.mxu0 0.0
    %666 = vmatpush.msra.mxu0 0.0
    %667 = vmatpush.msra.mxu0 0.0
    %668 = vmatpush.msra.mxu0 0.0
    %669 = vmatpush.msra.mxu0 0.0
    %670 = vmatpush.msra.mxu0 0.0
    %671 = vmatpush.msra.mxu0 %v650
    %672 = vmatpush.msra.mxu0 %v649
    %673 = vmatpush.msra.mxu0 %v648
    %674 = vmatpush.msra.mxu0 %v647
    %675 = vmatmul.f32.gmra.mxu0 %v657
    %v676 = vpop.f32.mrf.mxu0
    %v677 = vadd.f32 %v654, %v676
    %678 = vdwg.mxu0
    %v679 = vmax.f32 %v677, 0.0
    %s680 = scalar_lea.vmem [#allocation6], 192
    %v681 = vld [vmem:[%s680] sm:$0xff]
    %v682 = vld [vmem:[%s680 + $0x8] sm:$0xff]
    %v683 = vld [vmem:[%s680 + $0x10] sm:$0xff]
    %v684 = vld [vmem:[%s680 + $0x18] sm:$0xff]
    %s685 = scalar_lea.vmem [#allocation7], 6
    %v686 = vld [vmem:[%s685] sm:$0x1]
    %v688 = vperm.slane %v686, 0
    %v691 = vsel %vm125, %v679, 0
    %693 = vmatpush.msra.mxu0 0.0
    %694 = vmatpush.msra.mxu0 0.0
    %695 = vmatpush.msra.mxu0 0.0
    %696 = vmatpush.msra.mxu0 0.0
    %697 = vmatpush.msra.mxu0 0.0
    %698 = vmatpush.msra.mxu0 0.0
    %699 = vmatpush.msra.mxu0 0.0
    %700 = vmatpush.msra.mxu0 0.0
    %701 = vmatpush.msra.mxu0 0.0
    %702 = vmatpush.msra.mxu0 0.0
    %703 = vmatpush.msra.mxu0 0.0
    %704 = vmatpush.msra.mxu0 0.0
    %705 = vmatpush.msra.mxu0 %v684
    %706 = vmatpush.msra.mxu0 %v683
    %707 = vmatpush.msra.mxu0 %v682
    %708 = vmatpush.msra.mxu0 %v681
    %709 = vmatmul.f32.gmra.mxu0 %v691
    %v710 = vpop.f32.mrf.mxu0
    %v711 = vadd.f32 %v688, %v710
    %712 = vdwg.mxu0
    %713 = vst.msk [vmem:[%s6] sm:$0xff] %vm125, %v711
    // Predicated region
    $region42: #{forward.1} parent=1 // pred_check
      _
    $region43: #{forward.1} parent=1 // pred_check_branch
      %715 = sbr.rel (0) target = $region45
    $region44: #{forward.1} parent=1 // pred_region
      _
    $region45: #{forward.1} parent=1 // pred_fallthru
      _
    // Predicated region
    $region46: #{forward.1} parent=1 // pred_check
      _
    $region47: #{forward.1} parent=1 // pred_check_branch
      %717 = sbr.rel (0) target = $region49
    $region48: #{forward.1} parent=1 // pred_region
      _
    $region49: #{forward.1} parent=1 // pred_fallthru
      _
    %718 = vsyncpa [#allocation3], 1
    %719 = vsyncpa [#allocation5], 1
    %720 = vsyncpa [#allocation8], 1

</llo_original>
